<compile_context>
chip_gen: v5e
topology: v5e:2x2
jax: 0.10.0
libtpu: 0.0.40
codegen_flags: <defaults>
</compile_context>

<pallas_src>
import functools

import jax
import jax.numpy as jnp
from jax.experimental import pallas as pl
from jax.experimental.pallas import tpu as pltpu


# ----------------------------------------------------------------------------
# Parameter preprocessing (O(n_wires * 2**n_wires), done once per theta).
# ----------------------------------------------------------------------------
def _crz_phase_table(theta, n_wires, dim):
    """Accumulated ring phase per basis index k (torchquantum bit convention).

    Returns a stacked (2, dim) float32 array: [cos(ang_k), sin(ang_k)].
    """
    k = jnp.arange(dim, dtype=jnp.int32)
    ang = jnp.zeros((dim,), jnp.float32)
    for i in range(n_wires):
        ctrl_pos = n_wires - 1 - i                       # wire i -> bit (n_wires-1-i)
        tgt_pos = n_wires - 1 - ((i + 1) % n_wires)
        ctrl = (k >> ctrl_pos) & 1
        tgt = (k >> tgt_pos) & 1
        half = theta[i].astype(jnp.float32) * 0.5
        sign = jnp.where(tgt == 1, 1.0, -1.0).astype(jnp.float32)
        ang = ang + jnp.where(ctrl == 1, sign * half, 0.0)
    return jnp.stack([jnp.cos(ang), jnp.sin(ang)], axis=0)


# ----------------------------------------------------------------------------
# Kernel: one fused complex multiply per element, no transcendentals.
# ----------------------------------------------------------------------------
def crz_ring_kernel(phase_ref, xr_ref, xi_ref, or_ref, oi_ref):
    c = phase_ref[0:1]                      # (1, tile_r, L) or (1, D); batch-broadcast
    s = phase_ref[1:2]
    xr = xr_ref[...].astype(jnp.float32)    # upcast in vregs (bf16 stays bf16 on the wire)
    xi = xi_ref[...].astype(jnp.float32)
    or_ref[...] = (xr * c - xi * s).astype(or_ref.dtype)
    oi_ref[...] = (xr * s + xi * c).astype(oi_ref.dtype)


# ----------------------------------------------------------------------------
# Tiling helpers.
# ----------------------------------------------------------------------------
_TARGET_BLOCK_ELEMS = (3 << 20) // 4          # ~3 MiB of f32 per state block


def _pow2_floor(n):
    return 1 << (max(int(n), 1).bit_length() - 1)


def _pow2_ceil(n):
    n = max(int(n), 1)
    return 1 << (n - 1).bit_length()


def _pick_batch_tile(batch, cap, minimum):
    """Power-of-two batch tile in [minimum, ~cap] with bounded (<~12.5%) padding."""
    cap = max(int(cap), minimum)
    t = max(minimum, min(_pow2_floor(cap), _pow2_ceil(batch)))
    while t > minimum and ((-batch) % t) > max(batch // 8, minimum - 1):
        t //= 2
    return t


# ----------------------------------------------------------------------------
# Wrapper.
# ----------------------------------------------------------------------------
@functools.partial(jax.jit, static_argnames=("n_wires",))
def crz_ring(state_real, state_imag, theta, n_wires):
    """Apply the CRZ ring to a split-complex state of shape (B, 2**n_wires)."""
    B, D = state_real.shape
    assert D == 2 ** n_wires
    dtype = state_real.dtype
    itemsize = jnp.dtype(dtype).itemsize
    sub = 8 * max(1, 4 // itemsize)            # sublane tile: 8 (f32), 16 (bf16), 32 (i8)

    # Phase table depends only on the basis index (parameter-only preprocessing).
    phase = _crz_phase_table(theta, n_wires, D)          # (2, D) float32

    use_3d = D >= sub * 128
    if use_3d:
        # Fold the basis axis to (R, L) with R >= sub -> fully packed sublanes.
        L = min(1024, D // sub)                          # power of two, multiple of 128
        R = D // L                                       # power of two, >= sub
        rows_target = max(sub, _TARGET_BLOCK_ELEMS // L)
        tile_b = _pick_batch_tile(B, max(1, rows_target // sub), minimum=1)
        tile_r = min(R, _pow2_floor(max(sub, rows_target // tile_b)))
    else:
        # Small state dim: plain 2-D (B, D) tiling, full D per block, batch on sublanes.
        # TODO(synk): for D < 128 the lane dim is under-occupied (masked stores);
        # folding batch into the trailing dims would fix it but is not needed here.
        L = R = tile_r = 0                               # unused in this path
        tile_b = _pick_batch_tile(B, max(sub, _TARGET_BLOCK_ELEMS // D), minimum=sub)

    # Pad batch (bounded waste) instead of shrinking the tile to divide B.
    Bp = ((B + tile_b - 1) // tile_b) * tile_b
    xr, xi = state_real, state_imag
    if Bp != B:
        xr = jnp.pad(xr, ((0, Bp - B), (0, 0)))
        xi = jnp.pad(xi, ((0, Bp - B), (0, 0)))

    if use_3d:
        xr = xr.reshape(Bp, R, L)
        xi = xi.reshape(Bp, R, L)
        ph = phase.reshape(2, R, L)
        # Batch is the innermost grid axis -> the phase block index is constant
        # across the inner sweep, so the phase slab stays resident in VMEM.
        grid = (R // tile_r, Bp // tile_b)
        state_spec = pl.BlockSpec((tile_b, tile_r, L), lambda r, b: (b, r, 0))
        phase_spec = pl.BlockSpec((2, tile_r, L), lambda r, b: (0, r, 0))
        semantics = ("parallel", "parallel")
        out_shape = (Bp, R, L)
    else:
        ph = phase
        grid = (Bp // tile_b,)
        state_spec = pl.BlockSpec((tile_b, D), lambda b: (b, 0))
        phase_spec = pl.BlockSpec((2, D), lambda b: (0, 0))
        semantics = ("parallel",)
        out_shape = (Bp, D)

    cost = pl.CostEstimate(
        flops=6 * Bp * D,                                  # 4 mul + 2 add per element
        transcendentals=0,
        bytes_accessed=4 * Bp * D * itemsize + 2 * D * 4,  # read+write state, read phase
    )

    out_r, out_i = pl.pallas_call(
        crz_ring_kernel,
        out_shape=(jax.ShapeDtypeStruct(out_shape, dtype),
                   jax.ShapeDtypeStruct(out_shape, dtype)),
        grid=grid,
        in_specs=[phase_spec, state_spec, state_spec],
        out_specs=(state_spec, state_spec),
        compiler_params=pltpu.CompilerParams(
            dimension_semantics=semantics,
            vmem_limit_bytes=48 << 20,      # fits v7x (64 MiB phys); plenty on v5e/v6e
        ),
        cost_estimate=cost,
    )(ph, xr, xi)

    out_r = out_r.reshape(Bp, D)[:B]
    out_i = out_i.reshape(Bp, D)[:B]
    return out_r, out_i


# ----------------------------------------------------------------------------
# Pure-JAX reference (same sequential gate order as the PyTorch module).
# ----------------------------------------------------------------------------
def crz_ring_reference(state_c, theta, n_wires):
    B, D = state_c.shape
    k = jnp.arange(D, dtype=jnp.int32)
    out = state_c
    for i in range(n_wires):
        ctrl_pos = n_wires - 1 - i
        tgt_pos = n_wires - 1 - ((i + 1) % n_wires)
        ctrl = (k >> ctrl_pos) & 1
        tgt = (k >> tgt_pos) & 1
        half = theta[i] * 0.5
        sign = jnp.where(tgt == 1, 1.0, -1.0)
        ang = jnp.where(ctrl == 1, sign * half, 0.0)
        phase = jnp.cos(ang) + 1j * jnp.sin(ang)
        out = out * phase[None, :].astype(jnp.complex64)
    return out


def _run_case(key, n_wires, batch):
    dim = 2 ** n_wires
    k_r, k_i, k_t = jax.random.split(key, 3)
    xr = jax.random.normal(k_r, (batch, dim), dtype=jnp.float32)
    xi = jax.random.normal(k_i, (batch, dim), dtype=jnp.float32)
    norm = jnp.sqrt(jnp.sum(xr * xr + xi * xi, axis=-1, keepdims=True))
    xr = xr / norm
    xi = xi / norm
    theta = jax.random.uniform(
        k_t, (n_wires,), dtype=jnp.float32, minval=-jnp.pi, maxval=jnp.pi
    )

    out_r, out_i = crz_ring(xr, xi, theta, n_wires)
    out_r = jax.block_until_ready(out_r)
    out_i = jax.block_until_ready(out_i)

    ref = crz_ring_reference((xr + 1j * xi).astype(jnp.complex64), theta, n_wires)
    assert jnp.allclose(out_r + 1j * out_i, ref, atol=1e-5), (
        f"mismatch vs reference (n_wires={n_wires}, batch={batch})"
    )


if __name__ == "__main__":
    key = jax.random.PRNGKey(0)
    k1, k2 = jax.random.split(key)

    # Small 2-D path (D < 1024): ring of 8 qubits, state dim 256, batch 2.
    _run_case(k1, n_wires=8, batch=2)
    # 3-D (R, L)-folded path (D >= 1024): ring of 11 qubits, state dim 2048, batch 3.
    _run_case(k2, n_wires=11, batch=3)

    print("KERNEL_OK")
</pallas_src>

<mosaic_0001>
module attributes {stable_mosaic.version = 11 : i64} {
  func.func @crz_ring_kernel(%arg0: i32, %arg1: memref<2x256xf32, #tpu.memory_space<vmem>>, %arg2: memref<8x256xf32, #tpu.memory_space<vmem>>, %arg3: memref<8x256xf32, #tpu.memory_space<vmem>>, %arg4: memref<8x256xf32, #tpu.memory_space<vmem>>, %arg5: memref<8x256xf32, #tpu.memory_space<vmem>>) attributes {dimension_semantics = [#tpu.dimension_semantics<parallel>], iteration_bounds = array<i64: 1>, scalar_prefetch = 0 : i64, scratch_operands = 0 : i64, tpu.core_type = #tpu.core_type<tc>, window_params = [{pipeline_mode = #tpu.pipeline_mode<synchronous>, transform_indices = @transform_0, window_bounds = array<i64: 2, 256>}, {transform_indices = @transform_1, window_bounds = array<i64: 8, 256>}, {transform_indices = @transform_2, window_bounds = array<i64: 8, 256>}, {transform_indices = @transform_3, window_bounds = array<i64: 8, 256>}, {transform_indices = @transform_4, window_bounds = array<i64: 8, 256>}]} {
    %c0 = arith.constant 0 : index
    %c0_0 = arith.constant 0 : index
    %0 = vector.load %arg1[%c0, %c0_0] : memref<2x256xf32, #tpu.memory_space<vmem>>, vector<1x256xf32>
    %c1 = arith.constant 1 : index
    %c0_1 = arith.constant 0 : index
    %1 = vector.load %arg1[%c1, %c0_1] : memref<2x256xf32, #tpu.memory_space<vmem>>, vector<1x256xf32>
    %c0_2 = arith.constant 0 : index
    %c0_3 = arith.constant 0 : index
    %2 = vector.load %arg2[%c0_2, %c0_3] : memref<8x256xf32, #tpu.memory_space<vmem>>, vector<8x256xf32>
    %c0_4 = arith.constant 0 : index
    %c0_5 = arith.constant 0 : index
    %3 = vector.load %arg3[%c0_4, %c0_5] : memref<8x256xf32, #tpu.memory_space<vmem>>, vector<8x256xf32>
    %4 = vector.broadcast %0 : vector<1x256xf32> to vector<8x256xf32>
    %5 = arith.mulf %2, %4 : vector<8x256xf32>
    %6 = vector.broadcast %1 : vector<1x256xf32> to vector<8x256xf32>
    %7 = arith.mulf %3, %6 : vector<8x256xf32>
    %8 = arith.subf %5, %7 : vector<8x256xf32>
    %c0_6 = arith.constant 0 : index
    %c0_7 = arith.constant 0 : index
    %9 = vector.load %arg4[%c0_6, %c0_7] : memref<8x256xf32, #tpu.memory_space<vmem>>, vector<8x256xf32>
    tpu.vector_store %arg4[%c0_6, %c0_7], %8 {strides = array<i32>} : memref<8x256xf32, #tpu.memory_space<vmem>>, vector<8x256xf32>,
    %10 = vector.broadcast %1 : vector<1x256xf32> to vector<8x256xf32>
    %11 = arith.mulf %2, %10 : vector<8x256xf32>
    %12 = vector.broadcast %0 : vector<1x256xf32> to vector<8x256xf32>
    %13 = arith.mulf %3, %12 : vector<8x256xf32>
    %14 = arith.addf %11, %13 : vector<8x256xf32>
    %c0_8 = arith.constant 0 : index
    %c0_9 = arith.constant 0 : index
    %15 = vector.load %arg5[%c0_8, %c0_9] : memref<8x256xf32, #tpu.memory_space<vmem>>, vector<8x256xf32>
    tpu.vector_store %arg5[%c0_8, %c0_9], %14 {strides = array<i32>} : memref<8x256xf32, #tpu.memory_space<vmem>>, vector<8x256xf32>,
    return
  }
  func.func @transform_0(%arg0: i32) -> (i32, i32) {
    %c0_i32 = arith.constant 0 : i32
    %c0_i32_0 = arith.constant 0 : i32
    %c0_i32_1 = arith.constant 0 : i32
    return %c0_i32, %c0_i32_0 : i32, i32
  }
  func.func @transform_1(%arg0: i32) -> (i32, i32) {
    %c0_i32 = arith.constant 0 : i32
    %c0_i32_0 = arith.constant 0 : i32
    return %arg0, %c0_i32 : i32, i32
  }
  func.func @transform_2(%arg0: i32) -> (i32, i32) {
    %c0_i32 = arith.constant 0 : i32
    %c0_i32_0 = arith.constant 0 : i32
    return %arg0, %c0_i32 : i32, i32
  }
  func.func @transform_3(%arg0: i32) -> (i32, i32) {
    %c0_i32 = arith.constant 0 : i32
    %c0_i32_0 = arith.constant 0 : i32
    return %arg0, %c0_i32 : i32, i32
  }
  func.func @transform_4(%arg0: i32) -> (i32, i32) {
    %c0_i32 = arith.constant 0 : i32
    %c0_i32_0 = arith.constant 0 : i32
    return %arg0, %c0_i32 : i32, i32
  }
}

</mosaic_0001>

<llo_original>
// kernel: sin.0
$region0: #{sin.0}
  #allocation0 [shape = 's32[1]{0}', space=sflag, size = 0x4, scoped, tag = 'scoped memory for sin.0']
  %s0 = inlined_call_operand.vmem [shape: f32[1,256], index: 0, kind: input, shape index: {}]
  %s1 = inlined_call_operand.vmem [shape: f32[1,256], index: 1, kind: output, shape index: {}]
  %v2 = vld [vmem:[%s0] sm:$0x1]
  %v3 = vand.u32 2147483647, %v2
  %vm4 = vcmp.le.f32.partialorder %v3, 0.7853982
  %vm5 = vcmp.lt.s32.totalorder %v2, 0
  %v6 = vand.u32 %v2, 2139095040
  %v7 = vshrl.u32 %v6, 23
  %v8 = vsub.s32 %v7, 127
  %v9 = vand.u32 2147483647, %v2
  %v10 = vand.u32 %v9, 8388607
  %v11 = vor.u32 %v10, 8388608
  %v12 = vsub.s32 0, %v11
  %v13 = vadd.s32 %v8, 1
  %vm14 = vcmp.gt.s32.totalorder %v13, 0
  %v15 = vsel %vm14, %v13, 0
  %v16 = vshrl.u32 %v15, 5
  %v17 = vand.u32 %v15, 31
  %v18 = vsub.s32 32, %v17
  %v19 = vshrl.u32 683565275, %v18
  %v20 = vshll.u32 683565275, %v17
  %v21 = vshrl.u32 2475754826, %v18
  %v22 = vor.u32 %v20, %v21
  %v23 = vshll.u32 2475754826, %v17
  %v24 = vshrl.u32 2131351028, %v18
  %v25 = vor.u32 %v23, %v24
  %v26 = vshll.u32 2131351028, %v17
  %v27 = vshrl.u32 2102212464, %v18
  %v28 = vor.u32 %v26, %v27
  %v29 = vshll.u32 2102212464, %v17
  %v30 = vshrl.u32 920167782, %v18
  %v31 = vor.u32 %v29, %v30
  %v32 = vshll.u32 920167782, %v17
  %v33 = vshrl.u32 1326507024, %v18
  %v34 = vor.u32 %v32, %v33
  %vm35 = vcmp.lt.s32.totalorder %v16, 1
  %vm36 = vcmp.lt.s32.totalorder %v16, 2
  %vm37 = vcmp.lt.s32.totalorder %v16, 3
  %vm38 = vcmp.lt.s32.totalorder %v16, 4
  %v39 = vsel %vm35, %v19, %v22
  %v40 = vsel %vm38, %v28, 2102212464
  %v41 = vsel %vm37, %v25, %v40
  %v42 = vsel %vm36, %v39, %v41
  %v43 = vsel %vm35, %v22, %v25
  %v44 = vsel %vm38, %v31, 920167782
  %v45 = vsel %vm37, %v28, %v44
  %v46 = vsel %vm36, %v43, %v45
  %v47 = vsel %vm35, %v25, %v28
  %v48 = vsel %vm38, %v34, 1326507024
  %v49 = vsel %vm37, %v31, %v48
  %v50 = vsel %vm36, %v47, %v49
  %v51 = vshll.u32 %v11, 8
  %v52 = vand.u32 %v51, 65535
  %v53 = vshrl.u32 %v51, 16
  %v54 = vand.u32 %v50, 65535
  %v55 = vshrl.u32 %v50, 16
  %v56 = vmul.u32 %v52, %v54
  %v57 = vmul.u32 %v52, %v55
  %v58 = vmul.u32 %v53, %v54
  %v59 = vmul.u32 %v53, %v55
  %v60 = vshll.u32 %v57, 16
  %v61 = vshrl.u32 %v57, 16
  %v62 = vshll.u32 %v58, 16
  %v63 = vshrl.u32 %v58, 16
  %vm64 = vc.u32 %v56, %v60
  %v65 = vsel %vm64, 1, 0
  %v66 = vadd.s32 %v56, %v60
  %v67 = vadd.s32 %v59, %v65
  %vm68 = vc.u32 %v66, %v62
  %v69 = vsel %vm68, 1, 0
  %v70 = vadd.s32 %v66, %v62
  %v71 = vadd.s32 %v67, %v69
  %v72 = vadd.s32 %v71, %v61
  %v73 = vadd.s32 %v72, %v63
  %v74 = vand.u32 %v51, 65535
  %v75 = vshrl.u32 %v51, 16
  %v76 = vand.u32 %v46, 65535
  %v77 = vshrl.u32 %v46, 16
  %v78 = vmul.u32 %v74, %v76
  %v79 = vmul.u32 %v74, %v77
  %v80 = vmul.u32 %v75, %v76
  %v81 = vmul.u32 %v75, %v77
  %v82 = vshll.u32 %v79, 16
  %v83 = vshrl.u32 %v79, 16
  %v84 = vshll.u32 %v80, 16
  %v85 = vshrl.u32 %v80, 16
  %vm86 = vc.u32 %v78, %v82
  %v87 = vsel %vm86, 1, 0
  %v88 = vadd.s32 %v78, %v82
  %v89 = vadd.s32 %v81, %v87
  %vm90 = vc.u32 %v88, %v84
  %v91 = vsel %vm90, 1, 0
  %v92 = vadd.s32 %v88, %v84
  %v93 = vadd.s32 %v89, %v91
  %v94 = vadd.s32 %v93, %v83
  %v95 = vadd.s32 %v94, %v85
  %v96 = vmul.u32 %v51, %v42
  %v97 = vadd.s32 %v73, %v92
  %vm98 = vc.u32 %v73, %v92
  %v99 = vadd.s32 %v95, 1
  %v100 = vsel %vm98, %v99, %v95
  %v101 = vadd.s32 %v96, %v100
  %v102 = vadd.s32 %v101, 536870912
  %v103 = vshrl.u32 %v102, 30
  %v104 = vshll.u32 %v103, 30
  %v105 = vsub.s32 %v101, %v104
  %vm106 = vcmp.lt.s32.totalorder %v105, 0
  %v107 = vsub.s32 0, %v105
  %v108 = vsel %vm106, %v107, %v105
  %v109 = vclz %v108
  %v110 = vsub.s32 %v109, 2
  %vm111 = vcmp.gt.s32.totalorder 0, %v110
  %v112 = vsel %vm111, 0, %v110
  %v113 = vsub.s32 32, %v112
  %v114 = vshll.u32 %v105, %v112
  %v115 = vshrl.u32 %v97, %v113
  %v116 = vor.u32 %v114, %v115
  %v117 = vsub.s32 4294967266, %v112
  %v118 = vadd.s32 %v117, 127
  %v119 = vshll.u32 %v118, 23
  %v120 = vor.u32 4788187, %v119
  %v121 = vand.u32 2147483647, %v120
  %v123 = vcvt.s32.f32 %v116
  %v124 = vmul.f32 %v123, %v121
  %v125 = vxor.u32 %v124, 2147483648
  %v126 = vsel %vm5, %v125, %v124
  %v127 = vsub.s32 4, %v103
  %v128 = vsel %vm5, %v127, %v103
  %v129 = vsel %vm4, %v2, %v126
  %v130 = vsel %vm4, 0, %v128
  %v131 = vmul.f32 %v129, %v129
  %v132 = vmul.f32 %v131, -0.001358992
  %v133 = vadd.f32 %v132, 0.041655596
  %v134 = vmul.f32 %v131, %v133
  %v135 = vadd.f32 %v134, -0.4999988
  %v136 = vmul.f32 %v131, %v135
  %v137 = vadd.f32 1.0, %v136
  %v138 = vmul.f32 %v129, %v129
  %v139 = vmul.f32 %v138, -0.00019511016
  %v140 = vadd.f32 %v139, 0.008332121
  %v141 = vmul.f32 %v138, %v140
  %v142 = vadd.f32 %v141, -0.16666654
  %v143 = vmul.f32 %v138, %v142
  %v144 = vadd.f32 %v143, 1.0
  %v145 = vmul.f32 %v144, %v129
  %vm146 = vweird.f32 %v2
  %v147 = vadd.s32 %v130, 3
  %v148 = vand.u32 %v147, 3
  %vm149 = vcmp.lt.s32.totalorder %v148, 2
  %vm150 = vcmp.eq.s32.totalorder %v148, 0
  %v151 = vxor.u32 %v145, 2147483648
  %v152 = vsel %vm150, %v137, %v151
  %vm153 = vcmp.eq.s32.totalorder %v148, 2
  %v154 = vxor.u32 %v137, 2147483648
  %v155 = vsel %vm153, %v154, %v145
  %v156 = vsel %vm149, %v152, %v155
  %v157 = vsel %vm146, nan, %v156
  %158 = vst [vmem:[%s1] sm:$0x1] %v157
  %s159 = scalar_lea.vmem %s0, 1
  %v160 = vld [vmem:[%s159] sm:$0x1]
  %v161 = vand.u32 2147483647, %v160
  %vm162 = vcmp.le.f32.partialorder %v161, 0.7853982
  %vm163 = vcmp.lt.s32.totalorder %v160, 0
  %v164 = vand.u32 %v160, 2139095040
  %v165 = vshrl.u32 %v164, 23
  %v166 = vsub.s32 %v165, 127
  %v167 = vand.u32 2147483647, %v160
  %v168 = vand.u32 %v167, 8388607
  %v169 = vor.u32 %v168, 8388608
  %v170 = vsub.s32 0, %v169
  %v171 = vadd.s32 %v166, 1
  %vm172 = vcmp.gt.s32.totalorder %v171, 0
  %v173 = vsel %vm172, %v171, 0
  %v174 = vshrl.u32 %v173, 5
  %v175 = vand.u32 %v173, 31
  %v176 = vsub.s32 32, %v175
  %v177 = vshrl.u32 683565275, %v176
  %v178 = vshll.u32 683565275, %v175
  %v179 = vshrl.u32 2475754826, %v176
  %v180 = vor.u32 %v178, %v179
  %v181 = vshll.u32 2475754826, %v175
  %v182 = vshrl.u32 2131351028, %v176
  %v183 = vor.u32 %v181, %v182
  %v184 = vshll.u32 2131351028, %v175
  %v185 = vshrl.u32 2102212464, %v176
  %v186 = vor.u32 %v184, %v185
  %v187 = vshll.u32 2102212464, %v175
  %v188 = vshrl.u32 920167782, %v176
  %v189 = vor.u32 %v187, %v188
  %v190 = vshll.u32 920167782, %v175
  %v191 = vshrl.u32 1326507024, %v176
  %v192 = vor.u32 %v190, %v191
  %vm193 = vcmp.lt.s32.totalorder %v174, 1
  %vm194 = vcmp.lt.s32.totalorder %v174, 2
  %vm195 = vcmp.lt.s32.totalorder %v174, 3
  %vm196 = vcmp.lt.s32.totalorder %v174, 4
  %v197 = vsel %vm193, %v177, %v180
  %v198 = vsel %vm196, %v186, 2102212464
  %v199 = vsel %vm195, %v183, %v198
  %v200 = vsel %vm194, %v197, %v199
  %v201 = vsel %vm193, %v180, %v183
  %v202 = vsel %vm196, %v189, 920167782
  %v203 = vsel %vm195, %v186, %v202
  %v204 = vsel %vm194, %v201, %v203
  %v205 = vsel %vm193, %v183, %v186
  %v206 = vsel %vm196, %v192, 1326507024
  %v207 = vsel %vm195, %v189, %v206
  %v208 = vsel %vm194, %v205, %v207
  %v209 = vshll.u32 %v169, 8
  %v210 = vand.u32 %v209, 65535
  %v211 = vshrl.u32 %v209, 16
  %v212 = vand.u32 %v208, 65535
  %v213 = vshrl.u32 %v208, 16
  %v214 = vmul.u32 %v210, %v212
  %v215 = vmul.u32 %v210, %v213
  %v216 = vmul.u32 %v211, %v212
  %v217 = vmul.u32 %v211, %v213
  %v218 = vshll.u32 %v215, 16
  %v219 = vshrl.u32 %v215, 16
  %v220 = vshll.u32 %v216, 16
  %v221 = vshrl.u32 %v216, 16
  %vm222 = vc.u32 %v214, %v218
  %v223 = vsel %vm222, 1, 0
  %v224 = vadd.s32 %v214, %v218
  %v225 = vadd.s32 %v217, %v223
  %vm226 = vc.u32 %v224, %v220
  %v227 = vsel %vm226, 1, 0
  %v228 = vadd.s32 %v224, %v220
  %v229 = vadd.s32 %v225, %v227
  %v230 = vadd.s32 %v229, %v219
  %v231 = vadd.s32 %v230, %v221
  %v232 = vand.u32 %v209, 65535
  %v233 = vshrl.u32 %v209, 16
  %v234 = vand.u32 %v204, 65535
  %v235 = vshrl.u32 %v204, 16
  %v236 = vmul.u32 %v232, %v234
  %v237 = vmul.u32 %v232, %v235
  %v238 = vmul.u32 %v233, %v234
  %v239 = vmul.u32 %v233, %v235
  %v240 = vshll.u32 %v237, 16
  %v241 = vshrl.u32 %v237, 16
  %v242 = vshll.u32 %v238, 16
  %v243 = vshrl.u32 %v238, 16
  %vm244 = vc.u32 %v236, %v240
  %v245 = vsel %vm244, 1, 0
  %v246 = vadd.s32 %v236, %v240
  %v247 = vadd.s32 %v239, %v245
  %vm248 = vc.u32 %v246, %v242
  %v249 = vsel %vm248, 1, 0
  %v250 = vadd.s32 %v246, %v242
  %v251 = vadd.s32 %v247, %v249
  %v252 = vadd.s32 %v251, %v241
  %v253 = vadd.s32 %v252, %v243
  %v254 = vmul.u32 %v209, %v200
  %v255 = vadd.s32 %v231, %v250
  %vm256 = vc.u32 %v231, %v250
  %v257 = vadd.s32 %v253, 1
  %v258 = vsel %vm256, %v257, %v253
  %v259 = vadd.s32 %v254, %v258
  %v260 = vadd.s32 %v259, 536870912
  %v261 = vshrl.u32 %v260, 30
  %v262 = vshll.u32 %v261, 30
  %v263 = vsub.s32 %v259, %v262
  %vm264 = vcmp.lt.s32.totalorder %v263, 0
  %v265 = vsub.s32 0, %v263
  %v266 = vsel %vm264, %v265, %v263
  %v267 = vclz %v266
  %v268 = vsub.s32 %v267, 2
  %vm269 = vcmp.gt.s32.totalorder 0, %v268
  %v270 = vsel %vm269, 0, %v268
  %v271 = vsub.s32 32, %v270
  %v272 = vshll.u32 %v263, %v270
  %v273 = vshrl.u32 %v255, %v271
  %v274 = vor.u32 %v272, %v273
  %v275 = vsub.s32 4294967266, %v270
  %v276 = vadd.s32 %v275, 127
  %v277 = vshll.u32 %v276, 23
  %v278 = vor.u32 4788187, %v277
  %v279 = vand.u32 2147483647, %v278
  %v281 = vcvt.s32.f32 %v274
  %v282 = vmul.f32 %v281, %v279
  %v283 = vxor.u32 %v282, 2147483648
  %v284 = vsel %vm163, %v283, %v282
  %v285 = vsub.s32 4, %v261
  %v286 = vsel %vm163, %v285, %v261
  %v287 = vsel %vm162, %v160, %v284
  %v288 = vsel %vm162, 0, %v286
  %v289 = vmul.f32 %v287, %v287
  %v290 = vmul.f32 %v289, -0.001358992
  %v291 = vadd.f32 %v290, 0.041655596
  %v292 = vmul.f32 %v289, %v291
  %v293 = vadd.f32 %v292, -0.4999988
  %v294 = vmul.f32 %v289, %v293
  %v295 = vadd.f32 1.0, %v294
  %v296 = vmul.f32 %v287, %v287
  %v297 = vmul.f32 %v296, -0.00019511016
  %v298 = vadd.f32 %v297, 0.008332121
  %v299 = vmul.f32 %v296, %v298
  %v300 = vadd.f32 %v299, -0.16666654
  %v301 = vmul.f32 %v296, %v300
  %v302 = vadd.f32 %v301, 1.0
  %v303 = vmul.f32 %v302, %v287
  %vm304 = vweird.f32 %v160
  %v305 = vadd.s32 %v288, 3
  %v306 = vand.u32 %v305, 3
  %vm307 = vcmp.lt.s32.totalorder %v306, 2
  %vm308 = vcmp.eq.s32.totalorder %v306, 0
  %v309 = vxor.u32 %v303, 2147483648
  %v310 = vsel %vm308, %v295, %v309
  %vm311 = vcmp.eq.s32.totalorder %v306, 2
  %v312 = vxor.u32 %v295, 2147483648
  %v313 = vsel %vm311, %v312, %v303
  %v314 = vsel %vm307, %v310, %v313
  %v315 = vsel %vm304, nan, %v314
  %s316 = scalar_lea.vmem %s1, 1
  %317 = vst [vmem:[%s316] sm:$0x1] %v315

// kernel: crz_ring.1
$region0: #{crz_ring.1}
  #allocation0 [shape = 'u32[]', space=smem, size = 0x4, offset = 0x4, fixed_abs, tag = 'smem constant byte address 0x4 - core index']
  #allocation1 [shape = 'u32[72,128]{1,0:T(1,128)}', space=vmem, size = 0x9000, scoped, tag = 'internal scratch']
  %s0 = inlined_call_operand.vmem [shape: f32[2,256], index: 0, kind: input, shape index: {}]
  %s1 = inlined_call_operand.vmem [shape: f32[8,256], index: 1, kind: input, shape index: {}]
  %s2 = inlined_call_operand.vmem [shape: f32[8,256], index: 2, kind: input, shape index: {}]
  %s3 = inlined_call_operand.vmem [shape: f32[8,256], index: 3, kind: output, shape index: {0}]
  %s4 = inlined_call_operand.vmem [shape: f32[8,256], index: 4, kind: output, shape index: {1}]
  %5 = xla_tuple %s3, %s4
  %s6 = sld [smem:[#allocation0]]
  $region30: #{crz_ring.1} parent=0
    _
  %s8 = ssub.s32 1, %s6
  %s9 = scalar_select 0, %s8, %s6
  // Predicated region
  $region2: #{crz_ring.1} parent=0 // pred_check
    _
  $region3: #{crz_ring.1} parent=0 // pred_check_branch
    %11 = sbr.rel (0) target = $region5
  $region4: #{crz_ring.1} parent=0 // pred_region
    _
  $region5: #{crz_ring.1} parent=0 // pred_fallthru
    _
  // Predicated region
  $region6: #{crz_ring.1} parent=0 // pred_check
    _
  $region7: #{crz_ring.1} parent=0 // pred_check_branch
    %13 = sbr.rel (0) target = $region9
  $region8: #{crz_ring.1} parent=0 // pred_region
    _
  $region9: #{crz_ring.1} parent=0 // pred_fallthru
    _
  // Predicated region
  $region10: #{crz_ring.1} parent=0 // pred_check
    _
  $region11: #{crz_ring.1} parent=0 // pred_check_branch
    %15 = sbr.rel (0) target = $region13
  $region12: #{crz_ring.1} parent=0 // pred_region
    _
  $region13: #{crz_ring.1} parent=0 // pred_fallthru
    _
  %v16 = vld [vmem:[%s0] ss:$2 sm:$0x3]
  %s17 = scalar_lea.vmem %s0, 1
  %v18 = vld [vmem:[%s17] ss:$2 sm:$0x3]
  %v19 = vld [vmem:[%s1] sm:$0xff]
  %v20 = vld [vmem:[%s1 + $0x8] sm:$0xff]
  %v21 = vld [vmem:[%s2] sm:$0xff]
  %v22 = vld [vmem:[%s2 + $0x8] sm:$0xff]
  %v24 = vperm.slane %v16, 0
  %v25 = vperm.slane %v16, 1
  %v28 = vmul.f32 %v19, %v24
  %v29 = vmul.f32 %v20, %v25
  %v31 = vperm.slane %v18, 0
  %v32 = vperm.slane %v18, 1
  %v35 = vmul.f32 %v21, %v31
  %v36 = vmul.f32 %v22, %v32
  %v37 = vsub.f32 %v28, %v35
  %v38 = vsub.f32 %v29, %v36
  %39 = vst [vmem:[%s3] sm:$0xff] %v37
  %40 = vst [vmem:[%s3 + $0x8] sm:$0xff] %v38
  %v41 = vmul.f32 %v19, %v31
  %v42 = vmul.f32 %v20, %v32
  %v43 = vmul.f32 %v21, %v24
  %v44 = vmul.f32 %v22, %v25
  %v45 = vadd.f32 %v41, %v43
  %v46 = vadd.f32 %v42, %v44
  %47 = vst [vmem:[%s4] sm:$0xff] %v45
  %48 = vst [vmem:[%s4 + $0x8] sm:$0xff] %v46
  // Predicated region
  $region14: #{crz_ring.1} parent=0 // pred_check
    _
  $region15: #{crz_ring.1} parent=0 // pred_check_branch
    %50 = sbr.rel (0) target = $region17
  $region16: #{crz_ring.1} parent=0 // pred_region
    _
  $region17: #{crz_ring.1} parent=0 // pred_fallthru
    _
  // Predicated region
  $region18: #{crz_ring.1} parent=0 // pred_check
    _
  $region19: #{crz_ring.1} parent=0 // pred_check_branch
    %52 = sbr.rel (0) target = $region21
  $region20: #{crz_ring.1} parent=0 // pred_region
    _
  $region21: #{crz_ring.1} parent=0 // pred_fallthru
    _
  // Predicated region
  $region22: #{crz_ring.1} parent=0 // pred_check
    _
  $region23: #{crz_ring.1} parent=0 // pred_check_branch
    %54 = sbr.rel (0) target = $region25
  $region24: #{crz_ring.1} parent=0 // pred_region
    _
  $region25: #{crz_ring.1} parent=0 // pred_fallthru
    _
  // Predicated region
  $region26: #{crz_ring.1} parent=0 // pred_check
    _
  $region27: #{crz_ring.1} parent=0 // pred_check_branch
    %56 = sbr.rel (0) target = $region29
  $region28: #{crz_ring.1} parent=0 // pred_region
    _
  $region29: #{crz_ring.1} parent=0 // pred_fallthru
    _

</llo_original>
